<compile_context>
chip_gen: v7x
topology: tpu7x:2x2x1
jax: 0.10.0
libtpu: 0.0.40
codegen_flags: <defaults>
</compile_context>

<pallas_src>
import functools

import jax
import jax.numpy as jnp
from jax.experimental import pallas as pl
from jax.experimental.pallas import tpu as pltpu

_LANES = 128            # full-lane (unmasked) vector loads / stores
_MAX_BLOCK_ROWS = 2048  # 2048 * 128 * 4 B = 1 MiB per block -> safe in scoped VMEM


def _sum_kernel(x_ref, sum_ref):
    """Accumulate the global sum of x into a resident (1,1) output block."""
    @pl.when(pl.program_id(0) == 0)
    def _init():
        sum_ref[...] = jnp.zeros_like(sum_ref)

    part = jnp.sum(x_ref[...], axis=0, keepdims=True)      # (1, LANES) sublane reduce
    sum_ref[...] += jnp.sum(part, axis=1, keepdims=True)   # (1, 1)     lane reduce


def _rescale_kernel(x_ref, sum_ref, o_ref, *, inv_n, sparsity):
    """Apply the rescale map; sum_ref holds the (1,1) global sum of x."""
    xbar = sum_ref[...] * inv_n                    # (1, 1)
    r = sparsity / xbar                            # (1, 1)
    beta = (1.0 - sparsity) / (1.0 - xbar)         # (1, 1)
    le = (r < 1.0).astype(jnp.float32)             # (1, 1)
    x = x_ref[...]                                 # (bm, LANES)
    o_ref[...] = le * (x * r) + (1.0 - le) * (1.0 - (1.0 - x) * beta)


@functools.partial(jax.jit, static_argnames=("sparsity",))
def rescale_prob_map(x, sparsity=1.0):
    """Pallas implementation of RescaleProbMap_Cartesian.forward(x)."""
    orig_shape = x.shape
    orig_dtype = x.dtype
    n = int(x.size)

    # Lane-dense 2-D view: (rows, 128) with rows a multiple of 8 (vreg tiling).
    rows = -(-n // _LANES)
    rows = ((rows + 7) // 8) * 8
    if rows <= _MAX_BLOCK_ROWS:
        bm = rows                                   # single block, no grid padding
    else:
        bm = _MAX_BLOCK_ROWS
        rows = ((rows + bm - 1) // bm) * bm         # pad so the grid tiles evenly
    padded = rows * _LANES
    grid = (rows // bm,)

    xf = jnp.ravel(x).astype(jnp.float32)
    xf = jnp.pad(xf, (0, padded - n))               # zero pad: does not perturb the sum
    x2 = xf.reshape(rows, _LANES)

    # ---- Pass 1: global sum (resident (1,1) accumulator across the grid) ----
    total = pl.pallas_call(
        _sum_kernel,
        out_shape=jax.ShapeDtypeStruct((1, 1), jnp.float32),
        grid_spec=pltpu.PrefetchScalarGridSpec(
            num_scalar_prefetch=0,
            grid=grid,
            in_specs=[pl.BlockSpec((bm, _LANES), lambda i: (i, 0))],
            out_specs=pl.BlockSpec((1, 1), lambda i: (0, 0)),
        ),
        compiler_params=pltpu.CompilerParams(
            dimension_semantics=("arbitrary",)),
        cost_estimate=pl.CostEstimate(
            flops=padded, transcendentals=0, bytes_accessed=4 * padded + 4),
    )(x2)

    # ---- Pass 2: elementwise rescale using scalars derived from the sum ----
    kernel = functools.partial(
        _rescale_kernel, inv_n=1.0 / float(n), sparsity=float(sparsity))
    y2 = pl.pallas_call(
        kernel,
        out_shape=jax.ShapeDtypeStruct((rows, _LANES), jnp.float32),
        grid_spec=pltpu.PrefetchScalarGridSpec(
            num_scalar_prefetch=0,
            grid=grid,
            in_specs=[pl.BlockSpec((bm, _LANES), lambda i: (i, 0)),
                      pl.BlockSpec((1, 1), lambda i: (0, 0))],
            out_specs=pl.BlockSpec((bm, _LANES), lambda i: (i, 0)),
        ),
        compiler_params=pltpu.CompilerParams(
            dimension_semantics=("parallel",)),
        cost_estimate=pl.CostEstimate(
            flops=8 * padded, transcendentals=0, bytes_accessed=8 * padded + 4),
    )(x2, total)

    return y2.reshape(-1)[:n].reshape(orig_shape).astype(orig_dtype)


def _reference(x, sparsity):
    xbar = jnp.mean(x)
    r = sparsity / xbar
    beta = (1.0 - sparsity) / (1.0 - xbar)
    le = (r < 1.0).astype(x.dtype)
    return le * x * r + (1.0 - le) * (1.0 - (1.0 - x) * beta)


if __name__ == "__main__":
    key = jax.random.PRNGKey(0)
    B, C, H, W = 2, 4, 16, 16
    # Probability-map-like input in (0, 1).
    x = jax.random.uniform(key, (B, C, H, W), dtype=jnp.float32,
                           minval=0.01, maxval=0.99)

    # Exercise both branches (r < 1 and r >= 1) plus the module default.
    for sparsity in (0.25, 0.75, 1.0):
        out = rescale_prob_map(x, sparsity=sparsity)
        out = jax.block_until_ready(out)
        ref = _reference(x, sparsity)
        assert out.shape == x.shape
        assert jnp.allclose(out, ref, atol=1e-5, rtol=1e-4), (
            f"mismatch at sparsity={sparsity}")

    print("KERNEL_OK")
</pallas_src>

<mosaic_0001>
module attributes {stable_mosaic.version = 11 : i64} {
  func.func @_sum_kernel(%arg0: i32, %arg1: memref<16x128xf32, #tpu.memory_space<vmem>>, %arg2: memref<1x1xf32, #tpu.memory_space<vmem>>) attributes {dimension_semantics = [#tpu.dimension_semantics<arbitrary>], iteration_bounds = array<i64: 1>, scalar_prefetch = 0 : i64, scratch_operands = 0 : i64, tpu.core_type = #tpu.core_type<tc>, window_params = [{transform_indices = @transform_0, window_bounds = array<i64: 16, 128>}, {pipeline_mode = #tpu.pipeline_mode<synchronous>, transform_indices = @transform_1, window_bounds = array<i64: 1, 1>}]} {
    %c0_i32 = arith.constant 0 : i32
    %0 = arith.cmpi eq, %arg0, %c0_i32 : i32
    %1 = arith.extui %0 : i1 to i32
    %c0_i32_0 = arith.constant 0 : i32
    %2 = arith.cmpi ne, %1, %c0_i32_0 : i32
    scf.if %2 {
      %cst_7 = arith.constant 0.000000e+00 : f32
      %11 = vector.broadcast %cst_7 : f32 to vector<1x1xf32>
      %c0_8 = arith.constant 0 : index
      %c0_9 = arith.constant 0 : index
      %12 = vector.load %arg2[%c0_8, %c0_9] : memref<1x1xf32, #tpu.memory_space<vmem>>, vector<1x1xf32>
      tpu.vector_store %arg2[%c0_8, %c0_9], %11 {strides = array<i32>} : memref<1x1xf32, #tpu.memory_space<vmem>>, vector<1x1xf32>,
    } else {
    }
    %c0 = arith.constant 0 : index
    %c0_1 = arith.constant 0 : index
    %3 = vector.load %arg1[%c0, %c0_1] : memref<16x128xf32, #tpu.memory_space<vmem>>, vector<16x128xf32>
    %cst = arith.constant dense<0.000000e+00> : vector<128xf32>
    %4 = vector.multi_reduction <add>, %3, %cst [0] : vector<16x128xf32> to vector<128xf32>
    %5 = vector.shape_cast %4 : vector<128xf32> to vector<1x128xf32>
    %c0_2 = arith.constant 0 : index
    %c0_3 = arith.constant 0 : index
    %6 = vector.load %arg2[%c0_2, %c0_3] : memref<1x1xf32, #tpu.memory_space<vmem>>, vector<1x1xf32>
    %cst_4 = arith.constant dense<0.000000e+00> : vector<1xf32>
    %7 = vector.multi_reduction <add>, %5, %cst_4 [1] : vector<1x128xf32> to vector<1xf32>
    %8 = vector.shape_cast %7 : vector<1xf32> to vector<1x1xf32>
    %9 = arith.addf %6, %8 : vector<1x1xf32>
    %c0_5 = arith.constant 0 : index
    %c0_6 = arith.constant 0 : index
    %10 = vector.load %arg2[%c0_5, %c0_6] : memref<1x1xf32, #tpu.memory_space<vmem>>, vector<1x1xf32>
    tpu.vector_store %arg2[%c0_5, %c0_6], %9 {strides = array<i32>} : memref<1x1xf32, #tpu.memory_space<vmem>>, vector<1x1xf32>,
    return
  }
  func.func @transform_0(%arg0: i32) -> (i32, i32) {
    %c0_i32 = arith.constant 0 : i32
    %c0_i32_0 = arith.constant 0 : i32
    return %arg0, %c0_i32 : i32, i32
  }
  func.func @transform_1(%arg0: i32) -> (i32, i32) {
    %c0_i32 = arith.constant 0 : i32
    %c0_i32_0 = arith.constant 0 : i32
    %c0_i32_1 = arith.constant 0 : i32
    return %c0_i32, %c0_i32_0 : i32, i32
  }
}

module attributes {stable_mosaic.version = 11 : i64} {
  func.func @_rescale_kernel(%arg0: i32, %arg1: memref<16x128xf32, #tpu.memory_space<vmem>>, %arg2: memref<1x1xf32, #tpu.memory_space<vmem>>, %arg3: memref<16x128xf32, #tpu.memory_space<vmem>>) attributes {dimension_semantics = [#tpu.dimension_semantics<parallel>], iteration_bounds = array<i64: 1>, scalar_prefetch = 0 : i64, scratch_operands = 0 : i64, tpu.core_type = #tpu.core_type<tc>, window_params = [{transform_indices = @transform_0, window_bounds = array<i64: 16, 128>}, {pipeline_mode = #tpu.pipeline_mode<synchronous>, transform_indices = @transform_1, window_bounds = array<i64: 1, 1>}, {transform_indices = @transform_2, window_bounds = array<i64: 16, 128>}]} {
    %c0 = arith.constant 0 : index
    %c0_0 = arith.constant 0 : index
    %0 = vector.load %arg2[%c0, %c0_0] : memref<1x1xf32, #tpu.memory_space<vmem>>, vector<1x1xf32>
    %cst = arith.constant 4.8828125E-4 : f32
    %1 = vector.broadcast %cst : f32 to vector<1x1xf32>
    %2 = arith.mulf %0, %1 : vector<1x1xf32>
    %cst_1 = arith.constant 2.500000e-01 : f32
    %3 = vector.broadcast %cst_1 : f32 to vector<1x1xf32>
    %4 = arith.divf %3, %2 : vector<1x1xf32>
    %cst_2 = arith.constant 1.000000e+00 : f32
    %5 = vector.broadcast %cst_2 : f32 to vector<1x1xf32>
    %6 = arith.subf %5, %2 : vector<1x1xf32>
    %cst_3 = arith.constant 7.500000e-01 : f32
    %7 = vector.broadcast %cst_3 : f32 to vector<1x1xf32>
    %8 = arith.divf %7, %6 : vector<1x1xf32>
    %cst_4 = arith.constant 1.000000e+00 : f32
    %9 = vector.broadcast %cst_4 : f32 to vector<1x1xf32>
    %10 = arith.cmpf olt, %4, %9 : vector<1x1xf32>
    %11 = arith.extui %10 : vector<1x1xi1> to vector<1x1xi32>
    %12 = arith.sitofp %11 : vector<1x1xi32> to vector<1x1xf32>
    %c0_5 = arith.constant 0 : index
    %c0_6 = arith.constant 0 : index
    %13 = vector.load %arg1[%c0_5, %c0_6] : memref<16x128xf32, #tpu.memory_space<vmem>>, vector<16x128xf32>
    %14 = vector.broadcast %4 : vector<1x1xf32> to vector<16x128xf32>
    %15 = arith.mulf %13, %14 : vector<16x128xf32>
    %16 = vector.broadcast %12 : vector<1x1xf32> to vector<16x128xf32>
    %17 = arith.mulf %16, %15 : vector<16x128xf32>
    %cst_7 = arith.constant 1.000000e+00 : f32
    %18 = vector.broadcast %cst_7 : f32 to vector<1x1xf32>
    %19 = arith.subf %18, %12 : vector<1x1xf32>
    %cst_8 = arith.constant 1.000000e+00 : f32
    %20 = vector.broadcast %cst_8 : f32 to vector<16x128xf32>
    %21 = arith.subf %20, %13 : vector<16x128xf32>
    %22 = vector.broadcast %8 : vector<1x1xf32> to vector<16x128xf32>
    %23 = arith.mulf %21, %22 : vector<16x128xf32>
    %cst_9 = arith.constant 1.000000e+00 : f32
    %24 = vector.broadcast %cst_9 : f32 to vector<16x128xf32>
    %25 = arith.subf %24, %23 : vector<16x128xf32>
    %26 = vector.broadcast %19 : vector<1x1xf32> to vector<16x128xf32>
    %27 = arith.mulf %26, %25 : vector<16x128xf32>
    %28 = arith.addf %17, %27 : vector<16x128xf32>
    %c0_10 = arith.constant 0 : index
    %c0_11 = arith.constant 0 : index
    %29 = vector.load %arg3[%c0_10, %c0_11] : memref<16x128xf32, #tpu.memory_space<vmem>>, vector<16x128xf32>
    tpu.vector_store %arg3[%c0_10, %c0_11], %28 {strides = array<i32>} : memref<16x128xf32, #tpu.memory_space<vmem>>, vector<16x128xf32>,
    return
  }
  func.func @transform_0(%arg0: i32) -> (i32, i32) {
    %c0_i32 = arith.constant 0 : i32
    %c0_i32_0 = arith.constant 0 : i32
    return %arg0, %c0_i32 : i32, i32
  }
  func.func @transform_1(%arg0: i32) -> (i32, i32) {
    %c0_i32 = arith.constant 0 : i32
    %c0_i32_0 = arith.constant 0 : i32
    %c0_i32_1 = arith.constant 0 : i32
    return %c0_i32, %c0_i32_0 : i32, i32
  }
  func.func @transform_2(%arg0: i32) -> (i32, i32) {
    %c0_i32 = arith.constant 0 : i32
    %c0_i32_0 = arith.constant 0 : i32
    return %arg0, %c0_i32 : i32, i32
  }
}

</mosaic_0001>

<llo_original>
// kernel: rescale_prob_map.2
$region0: #{rescale_prob_map.2}
  #allocation0 [shape = 'u32[]', space=smem, size = 0x4, offset = 0x4, fixed_abs, tag = 'smem constant byte address 0x4 - core index']
  #allocation1 [shape = 'u32[144,128]{1,0:T(1,128)}', space=vmem, size = 0x12000, scoped, tag = 'internal scratch']
  %s0 = inlined_call_operand.vmem [shape: f32[16,128], index: 0, kind: input, shape index: {}]
  %s1 = inlined_call_operand.hbm [shape: f32[1,1], index: 1, kind: output, shape index: {}]
  %s2 = sld [smem:[#allocation0]]
  $region18: #{rescale_prob_map.2} parent=0
    _
  %s4 = ssub.s32 1, %s2
  %s5 = scalar_select 0, %s4, %s2
  $region1: #{rescale_prob_map.2} parent=0
    #allocation2 [shape = 'u8[512]{0}', space=vmem, size = 0x400, scoped, tag = 'output window, operand 0, single buffered']
    #allocation3 [shape = 's32[1]{0}', space=sflag, size = 0x4, scoped, tag = 'scoped memory for rescale_prob_map.2']
    %6 = vsyncpa [#allocation3], 0
    // Predicated region
    $region2: #{rescale_prob_map.2} parent=1 // pred_check
      _
    $region3: #{rescale_prob_map.2} parent=1 // pred_check_branch
      %8 = sbr.rel (0) target = $region5
    $region4: #{rescale_prob_map.2} parent=1 // pred_region
      _
    $region5: #{rescale_prob_map.2} parent=1 // pred_fallthru
      _
    %p9 = scmp.eq.s32.totalorder 0, 0
    // Predicated region
    $region6: #{rescale_prob_map.2} parent=1 // pred_check
      %p10 = pneg %p9
    $region7: #{rescale_prob_map.2} parent=1 // pred_check_branch
      %12 = sbr.rel (%p10) target = $region9
    $region8: #{rescale_prob_map.2} parent=1 // pred_region
      %vm13 = vcmask 0
      %14 = vst.msk [vmem:[#allocation2] sm:$0x1] %vm13, 0.0
    $region9: #{rescale_prob_map.2} parent=1 // pred_fallthru
      _
    %v15 = vld [vmem:[%s0] sm:$0xff]
    %v16 = vld [vmem:[%s0 + $0x8] sm:$0xff]
    %v17 = vadd.f32 %v15, %v16
    %v18 = vrot.slane %v17, 4
    %v19 = vadd.f32 %v17, %v18
    %v20 = vrot.slane %v19, 2
    %v21 = vadd.f32 %v19, %v20
    %v22 = vrot.slane %v21, 1
    %v23 = vadd.f32 %v21, %v22
    %v24 = vld [vmem:[#allocation2] sm:$0x1]
    %25 = vadd.xlane.f32.xlu0 %v23
    %v26 = vpop.xlane.xlu0 %25
    %v27 = vadd.f32 %v24, %v26
    %vm28 = vcmask 0
    %29 = vst.msk [vmem:[#allocation2] sm:$0x1] %vm28, %v27
    // Predicated region
    $region10: #{rescale_prob_map.2} parent=1 // pred_check
      _
    $region11: #{rescale_prob_map.2} parent=1 // pred_check_branch
      %31 = sbr.rel (0) target = $region13
    $region12: #{rescale_prob_map.2} parent=1 // pred_region
      %s33 = ssub.s32 16, 16
      %34 = vsyncadd [#allocation3], %s33
      %s36 = sshll.u32 [#allocation2], 4
      %s37 = int_to_ptr.vmem [resolvable:$true] %s36
      %39 = dma.vmem_to_hbm [thread:$0]  %s37, 16, %s1, [#allocation3]
    $region13: #{rescale_prob_map.2} parent=1 // pred_fallthru
      _
    // Predicated region
    $region14: #{rescale_prob_map.2} parent=1 // pred_check
      _
    $region15: #{rescale_prob_map.2} parent=1 // pred_check_branch
      %41 = sbr.rel (0) target = $region17
    $region16: #{rescale_prob_map.2} parent=1 // pred_region
      %42 = dma.done [#allocation3], 16
    $region17: #{rescale_prob_map.2} parent=1 // pred_fallthru
      _
    %43 = vsyncpa [#allocation3], 1

// kernel: rescale_prob_map.3
$region0: #{rescale_prob_map.3}
  #allocation0 [shape = 'u32[]', space=smem, size = 0x4, offset = 0x4, fixed_abs, tag = 'smem constant byte address 0x4 - core index']
  #allocation1 [shape = 'u32[144,128]{1,0:T(1,128)}', space=vmem, size = 0x12000, scoped, tag = 'internal scratch']
  #allocation2 [shape = 'f32[1,1]{1,0:T(1,128)S(1)}', space=vmem, size = 0x200, scoped, tag = 'scoped memory for rescale_prob_map.3']
  %s0 = inlined_call_operand.vmem [shape: f32[16,128], index: 0, kind: input, shape index: {}]
  %s1 = inlined_call_operand.<no memory space> [shape: f32[1,1], index: 1, kind: input, shape index: {}]
  %s2 = inlined_call_operand.vmem [shape: f32[16,128], index: 2, kind: output, shape index: {}]
  %s3 = sld [smem:[#allocation0]]
  $region18: #{rescale_prob_map.3} parent=0
    _
  %s5 = ssub.s32 1, %s3
  %s6 = scalar_select 0, %s5, %s3
  %v7 = vstv %s1
  %8 = vst [vmem:[#allocation2] sm:$0x1] %v7
  // Predicated region
  $region2: #{rescale_prob_map.3} parent=0 // pred_check
    _
  $region3: #{rescale_prob_map.3} parent=0 // pred_check_branch
    %10 = sbr.rel (0) target = $region5
  $region4: #{rescale_prob_map.3} parent=0 // pred_region
    _
  $region5: #{rescale_prob_map.3} parent=0 // pred_fallthru
    _
  // Predicated region
  $region6: #{rescale_prob_map.3} parent=0 // pred_check
    _
  $region7: #{rescale_prob_map.3} parent=0 // pred_check_branch
    %12 = sbr.rel (0) target = $region9
  $region8: #{rescale_prob_map.3} parent=0 // pred_region
    _
  $region9: #{rescale_prob_map.3} parent=0 // pred_fallthru
    _
  %v13 = vld [vmem:[#allocation2] sm:$0x1]
  %v14 = vmul.f32 %v13, 0.00048828125
  %v15 = vrcp.pop %v14
  %v16 = vmul.f32 0.25, %v15
  %v17 = vsub.f32 1.0, %v14
  %v18 = vrcp.pop %v17
  %v19 = vmul.f32 0.75, %v18
  %vm20 = vcmp.lt.f32.partialorder %v16, 1.0
  %v21 = vsel %vm20, 1, 0
  %v22 = vcvt.s32.f32 %v21
  %v23 = vld [vmem:[%s0] sm:$0xff]
  %v24 = vld [vmem:[%s0 + $0x8] sm:$0xff]
  %v26 = vlaneseq
  %v27 = vshrl.u32 %v26, 7
  %v28 = vsub.s32 0, %v27
  %v29 = vrot.slane %v16, %v28
  %30 = vset.pattern.permute.xlu0 0
  %31 = vperm.xlu0 %30, %v29
  %v32 = vpop.permute.xlu0 %31
  %v34 = vmul.f32 %v23, %v32
  %v35 = vmul.f32 %v24, %v32
  %v37 = vlaneseq
  %v38 = vshrl.u32 %v37, 7
  %v39 = vsub.s32 0, %v38
  %v40 = vrot.slane %v22, %v39
  %41 = vset.pattern.permute.xlu0 0
  %42 = vperm.xlu0 %41, %v40
  %v43 = vpop.permute.xlu0 %42
  %v45 = vmul.f32 %v43, %v34
  %v46 = vmul.f32 %v43, %v35
  %v47 = vsub.f32 1.0, %v22
  %v48 = vsub.f32 1.0, %v23
  %v49 = vsub.f32 1.0, %v24
  %v51 = vlaneseq
  %v52 = vshrl.u32 %v51, 7
  %v53 = vsub.s32 0, %v52
  %v54 = vrot.slane %v19, %v53
  %55 = vset.pattern.permute.xlu0 0
  %56 = vperm.xlu0 %55, %v54
  %v57 = vpop.permute.xlu0 %56
  %v59 = vmul.f32 %v48, %v57
  %v60 = vmul.f32 %v49, %v57
  %v61 = vsub.f32 1.0, %v59
  %v62 = vsub.f32 1.0, %v60
  %v64 = vlaneseq
  %v65 = vshrl.u32 %v64, 7
  %v66 = vsub.s32 0, %v65
  %v67 = vrot.slane %v47, %v66
  %68 = vset.pattern.permute.xlu0 0
  %69 = vperm.xlu0 %68, %v67
  %v70 = vpop.permute.xlu0 %69
  %v72 = vmul.f32 %v70, %v61
  %v73 = vmul.f32 %v70, %v62
  %v74 = vadd.f32 %v45, %v72
  %v75 = vadd.f32 %v46, %v73
  %76 = vst [vmem:[%s2] sm:$0xff] %v74
  %77 = vst [vmem:[%s2 + $0x8] sm:$0xff] %v75
  // Predicated region
  $region10: #{rescale_prob_map.3} parent=0 // pred_check
    _
  $region11: #{rescale_prob_map.3} parent=0 // pred_check_branch
    %79 = sbr.rel (0) target = $region13
  $region12: #{rescale_prob_map.3} parent=0 // pred_region
    _
  $region13: #{rescale_prob_map.3} parent=0 // pred_fallthru
    _
  // Predicated region
  $region14: #{rescale_prob_map.3} parent=0 // pred_check
    _
  $region15: #{rescale_prob_map.3} parent=0 // pred_check_branch
    %81 = sbr.rel (0) target = $region17
  $region16: #{rescale_prob_map.3} parent=0 // pred_region
    _
  $region17: #{rescale_prob_map.3} parent=0 // pred_fallthru
    _

</llo_original>
